<compile_context>
chip_gen: v5e
topology: v5e:2x2
jax: 0.10.0
libtpu: 0.0.40
codegen_flags: <defaults>
</compile_context>

<pallas_src>
import math

import jax
import jax.numpy as jnp
from jax import lax
from jax.experimental import pallas as pl
from jax.experimental.pallas import tpu as pltpu


# ---------------------------------------------------------------------------
# helpers
# ---------------------------------------------------------------------------

def _round_up(x, m):
    return ((x + m - 1) // m) * m


def _choose_tile(total, max_tile, granule):
    """Largest multiple of `granule` that divides `total` and is <= max_tile."""
    assert total % granule == 0
    t = min(total, max_tile)
    t = (t // granule) * granule
    while total % t:
        t -= granule
    return t


# ---------------------------------------------------------------------------
# kernels
# ---------------------------------------------------------------------------

def _encode_kernel(x_ref, we_ref, z_ref, acc_ref):
    # x_ref : (TB, TF)       flattened-input tile (batch x flat)
    # we_ref: (latent, TF)   encoder weight tile, native nn.Linear layout
    # z_ref : (TB, latent)   latent codes for this batch tile
    # acc_ref: (TB, latent)  f32 VMEM scratch, resident across the K axis
    k = pl.program_id(1)

    @pl.when(k == 0)
    def _():
        acc_ref[...] = jnp.zeros_like(acc_ref)

    # z += x @ W_enc^T  (contract the flat dim of both operands -> lane-dense tiles)
    acc_ref[...] += lax.dot_general(
        x_ref[...], we_ref[...],
        dimension_numbers=(((1,), (1,)), ((), ())),
        preferred_element_type=jnp.float32)

    @pl.when(k == pl.num_programs(1) - 1)
    def _():
        z_ref[...] = acc_ref[...].astype(z_ref.dtype)


def _decode_kernel(z_ref, wd_ref, o_ref):
    # z_ref : (TB, latent)
    # wd_ref: (latent, TN)   decoder weight, pre-transposed once outside hot path
    # o_ref : (TB, TN)
    o_ref[...] = lax.dot_general(
        z_ref[...], wd_ref[...],
        dimension_numbers=(((1,), (0,)), ((), ())),
        preferred_element_type=jnp.float32).astype(o_ref.dtype)


# ---------------------------------------------------------------------------
# wrapper
# ---------------------------------------------------------------------------

def prepare_pca_autoencoder_params(w_enc, w_dec, *, compute_dtype=jnp.float32):
    """One-time weight prep, hoisted out of the per-forward hot path.

    w_enc: (latent, flat)  nn.Linear(flat, latent, bias=False).weight
    w_dec: (flat, latent)  nn.Linear(latent, flat, bias=False).weight
    Returns (w_enc_p, w_dec_t_p, flat_dim) with flat padded to a multiple of 128
    and both weights laid out with flat as the (lane-dense) last dim.
    """
    latent, flat_dim = w_enc.shape
    assert w_dec.shape == (flat_dim, latent)
    flat_pad = _round_up(flat_dim, 128)

    w_enc_p = w_enc                     # already (latent, flat): lane dim = flat
    w_dec_t = w_dec.T                   # (latent, flat): lane dim = flat
    if flat_pad != flat_dim:
        w_enc_p = jnp.pad(w_enc_p, ((0, 0), (0, flat_pad - flat_dim)))
        w_dec_t = jnp.pad(w_dec_t, ((0, 0), (0, flat_pad - flat_dim)))
    return (w_enc_p.astype(compute_dtype),
            w_dec_t.astype(compute_dtype),
            flat_dim)


def pca_autoencoder_forward(x, params, *, tb_max=256, tf_max=2048,
                            vmem_limit_bytes=48 * 1024 * 1024):
    """x: (B, C, H, W). params: output of prepare_pca_autoencoder_params."""
    w_enc_p, w_dec_t, flat_dim = params
    latent, flat_pad = w_enc_p.shape
    compute_dtype = w_enc_p.dtype

    B = x.shape[0]
    assert math.prod(x.shape[1:]) == flat_dim

    # ---- layout plumbing (wrapper side) ------------------------------------
    sublane = 8 if compute_dtype == jnp.dtype(jnp.float32) else 16
    b_pad = _round_up(B, sublane)
    tb = _choose_tile(b_pad, tb_max, sublane)
    tf = _choose_tile(flat_pad, tf_max, 128)
    nb, nk = b_pad // tb, flat_pad // tf

    x_f = x.reshape(B, flat_dim)                     # torch.flatten(start_dim=1)
    if b_pad != B or flat_pad != flat_dim:
        x_f = jnp.pad(x_f, ((0, b_pad - B), (0, flat_pad - flat_dim)))
    x_p = x_f.astype(compute_dtype)

    itemsize = compute_dtype.itemsize

    # ---- encoder: z = x @ W_enc^T  (K-reduction over the flat dim) ----------
    enc_cost = pl.CostEstimate(
        flops=2 * b_pad * flat_pad * latent,
        transcendentals=0,
        bytes_accessed=(b_pad * flat_pad + nb * latent * flat_pad) * itemsize
        + b_pad * latent * itemsize)

    z = pl.pallas_call(
        _encode_kernel,
        out_shape=jax.ShapeDtypeStruct((b_pad, latent), compute_dtype),
        grid_spec=pltpu.PrefetchScalarGridSpec(
            num_scalar_prefetch=0,
            grid=(nb, nk),
            in_specs=[
                pl.BlockSpec((tb, tf), lambda i, k: (i, k)),
                pl.BlockSpec((latent, tf), lambda i, k: (0, k)),
            ],
            out_specs=pl.BlockSpec((tb, latent), lambda i, k: (i, 0)),
            scratch_shapes=[pltpu.VMEM((tb, latent), jnp.float32)],
        ),
        compiler_params=pltpu.CompilerParams(
            dimension_semantics=("parallel", "arbitrary"),
            vmem_limit_bytes=vmem_limit_bytes),
        cost_estimate=enc_cost,
    )(x_p, w_enc_p)

    # ---- decoder: out = z @ W_dec^T  (flat dim tiled as the output-N axis) --
    dec_cost = pl.CostEstimate(
        flops=2 * b_pad * flat_pad * latent,
        transcendentals=0,
        bytes_accessed=(latent * flat_pad + nk * b_pad * latent) * itemsize
        + b_pad * flat_pad * x.dtype.itemsize)

    out_p = pl.pallas_call(
        _decode_kernel,
        out_shape=jax.ShapeDtypeStruct((b_pad, flat_pad), x.dtype),
        grid_spec=pltpu.PrefetchScalarGridSpec(
            num_scalar_prefetch=0,
            # flat tile outer -> each decoder weight tile DMA'd once, batch streamed
            grid=(nk, nb),
            in_specs=[
                pl.BlockSpec((tb, latent), lambda n, i: (i, 0)),
                pl.BlockSpec((latent, tf), lambda n, i: (0, n)),
            ],
            out_specs=pl.BlockSpec((tb, tf), lambda n, i: (i, n)),
        ),
        compiler_params=pltpu.CompilerParams(
            dimension_semantics=("parallel", "parallel"),
            vmem_limit_bytes=vmem_limit_bytes),
        cost_estimate=dec_cost,
    )(z, w_dec_t)

    return out_p[:B, :flat_dim].reshape(x.shape)


# ---------------------------------------------------------------------------
# demo / correctness check
# ---------------------------------------------------------------------------

if __name__ == "__main__":
    B, C, H, W = 2, 4, 16, 16
    flat_dim = C * H * W          # 1024
    latent_dim = 32

    key = jax.random.PRNGKey(0)
    kx, ke, kd = jax.random.split(key, 3)

    x = jax.random.normal(kx, (B, C, H, W), dtype=jnp.float32)
    # nn.Linear default init: U(-1/sqrt(fan_in), 1/sqrt(fan_in)), bias=False
    bound_e = 1.0 / math.sqrt(flat_dim)
    bound_d = 1.0 / math.sqrt(latent_dim)
    w_enc = jax.random.uniform(ke, (latent_dim, flat_dim), jnp.float32,
                               minval=-bound_e, maxval=bound_e)
    w_dec = jax.random.uniform(kd, (flat_dim, latent_dim), jnp.float32,
                               minval=-bound_d, maxval=bound_d)

    # Reference in plain JAX (same semantics as the PyTorch module).
    ref = (x.reshape(B, flat_dim) @ w_enc.T @ w_dec.T).reshape(x.shape)

    # f32 path (exact semantics of the original module).
    params_f32 = prepare_pca_autoencoder_params(w_enc, w_dec,
                                                compute_dtype=jnp.float32)
    out_f32 = pca_autoencoder_forward(x, params_f32)
    jax.block_until_ready(out_f32)
    assert out_f32.shape == x.shape
    assert jnp.allclose(out_f32, ref, atol=1e-4, rtol=1e-4), \
        float(jnp.max(jnp.abs(out_f32 - ref)))

    # bf16 compute path (halves HBM bytes moved; f32 accumulation on the MXU).
    params_bf16 = prepare_pca_autoencoder_params(w_enc, w_dec,
                                                 compute_dtype=jnp.bfloat16)
    out_bf16 = pca_autoencoder_forward(x, params_bf16)
    jax.block_until_ready(out_bf16)
    assert out_bf16.shape == x.shape
    assert jnp.allclose(out_bf16, ref, atol=3e-2, rtol=3e-2), \
        float(jnp.max(jnp.abs(out_bf16 - ref)))

    print("KERNEL_OK")
</pallas_src>

<mosaic_0001>
module attributes {stable_mosaic.version = 11 : i64} {
  func.func @_encode_kernel(%arg0: i32, %arg1: i32, %arg2: memref<8x1024xf32, #tpu.memory_space<vmem>>, %arg3: memref<32x1024xf32, #tpu.memory_space<vmem>>, %arg4: memref<8x32xf32, #tpu.memory_space<vmem>>, %arg5: memref<8x32xf32, #tpu.memory_space<vmem>>) attributes {dimension_semantics = [#tpu.dimension_semantics<parallel>, #tpu.dimension_semantics<arbitrary>], iteration_bounds = array<i64: 1, 1>, scalar_prefetch = 0 : i64, scratch_operands = 1 : i64, tpu.core_type = #tpu.core_type<tc>, window_params = [{transform_indices = @transform_0, window_bounds = array<i64: 8, 1024>}, {transform_indices = @transform_1, window_bounds = array<i64: 32, 1024>}, {transform_indices = @transform_2, window_bounds = array<i64: 8, 32>}]} {
    %c0_i32 = arith.constant 0 : i32
    %0 = arith.cmpi eq, %arg1, %c0_i32 : i32
    %1 = arith.extui %0 : i1 to i32
    %c0_i32_0 = arith.constant 0 : i32
    %2 = arith.cmpi ne, %1, %c0_i32_0 : i32
    scf.if %2 {
      %cst_10 = arith.constant 0.000000e+00 : f32
      %12 = vector.broadcast %cst_10 : f32 to vector<8x32xf32>
      %c0_11 = arith.constant 0 : index
      %c0_12 = arith.constant 0 : index
      %13 = vector.load %arg5[%c0_11, %c0_12] : memref<8x32xf32, #tpu.memory_space<vmem>>, vector<8x32xf32>
      tpu.vector_store %arg5[%c0_11, %c0_12], %12 {strides = array<i32>} : memref<8x32xf32, #tpu.memory_space<vmem>>, vector<8x32xf32>,
    } else {
    }
    %c0 = arith.constant 0 : index
    %c0_1 = arith.constant 0 : index
    %3 = vector.load %arg5[%c0, %c0_1] : memref<8x32xf32, #tpu.memory_space<vmem>>, vector<8x32xf32>
    %c0_2 = arith.constant 0 : index
    %c0_3 = arith.constant 0 : index
    %4 = vector.load %arg2[%c0_2, %c0_3] : memref<8x1024xf32, #tpu.memory_space<vmem>>, vector<8x1024xf32>
    %c0_4 = arith.constant 0 : index
    %c0_5 = arith.constant 0 : index
    %5 = vector.load %arg3[%c0_4, %c0_5] : memref<32x1024xf32, #tpu.memory_space<vmem>>, vector<32x1024xf32>
    %cst = arith.constant dense<0.000000e+00> : vector<8x32xf32>
    %6 = tpu.matmul %4, %5, %cst {dimension_numbers = #tpu.dot_dimension_numbers<[1], [1], [0], [0], [0, 0, 1, 0], [], []>} : vector<8x1024xf32>, vector<32x1024xf32>, vector<8x32xf32> -> vector<8x32xf32>
    %7 = arith.addf %3, %6 : vector<8x32xf32>
    %c0_6 = arith.constant 0 : index
    %c0_7 = arith.constant 0 : index
    %8 = vector.load %arg5[%c0_6, %c0_7] : memref<8x32xf32, #tpu.memory_space<vmem>>, vector<8x32xf32>
    tpu.vector_store %arg5[%c0_6, %c0_7], %7 {strides = array<i32>} : memref<8x32xf32, #tpu.memory_space<vmem>>, vector<8x32xf32>,
    %c0_i32_8 = arith.constant 0 : i32
    %9 = arith.cmpi eq, %arg1, %c0_i32_8 : i32
    %10 = arith.extui %9 : i1 to i32
    %c0_i32_9 = arith.constant 0 : i32
    %11 = arith.cmpi ne, %10, %c0_i32_9 : i32
    scf.if %11 {
      %c0_10 = arith.constant 0 : index
      %c0_11 = arith.constant 0 : index
      %12 = vector.load %arg5[%c0_10, %c0_11] : memref<8x32xf32, #tpu.memory_space<vmem>>, vector<8x32xf32>
      %c0_12 = arith.constant 0 : index
      %c0_13 = arith.constant 0 : index
      %13 = vector.load %arg4[%c0_12, %c0_13] : memref<8x32xf32, #tpu.memory_space<vmem>>, vector<8x32xf32>
      tpu.vector_store %arg4[%c0_12, %c0_13], %12 {strides = array<i32>} : memref<8x32xf32, #tpu.memory_space<vmem>>, vector<8x32xf32>,
    } else {
    }
    return
  }
  func.func @transform_0(%arg0: i32, %arg1: i32) -> (i32, i32) {
    %c0_i32 = arith.constant 0 : i32
    return %arg0, %arg1 : i32, i32
  }
  func.func @transform_1(%arg0: i32, %arg1: i32) -> (i32, i32) {
    %c0_i32 = arith.constant 0 : i32
    %c0_i32_0 = arith.constant 0 : i32
    return %c0_i32, %arg1 : i32, i32
  }
  func.func @transform_2(%arg0: i32, %arg1: i32) -> (i32, i32) {
    %c0_i32 = arith.constant 0 : i32
    %c0_i32_0 = arith.constant 0 : i32
    return %arg0, %c0_i32 : i32, i32
  }
}

</mosaic_0001>

<llo_original>
// kernel: tpu_custom_call.1
$region0: #{tpu_custom_call.1}
  #allocation0 [shape = 'u32[]', space=smem, size = 0x4, offset = 0x4, fixed_abs, tag = 'smem constant byte address 0x4 - core index']
  #allocation1 [shape = 'u32[72,128]{1,0:T(1,128)}', space=vmem, size = 0x9000, scoped, tag = 'internal scratch']
  #allocation2 [shape = 'f32[8,32]{1,0:T(8,128)}', space=vmem, size = 0x1000, scoped, tag = 'scratch operand']
  %s0 = inlined_call_operand.hbm [shape: f32[8,1024], index: 0, kind: input, shape index: {}]
  %s1 = inlined_call_operand.hbm [shape: f32[32,1024], index: 1, kind: input, shape index: {}]
  %s2 = inlined_call_operand.hbm [shape: f32[8,32], index: 2, kind: output, shape index: {}]
  %s3 = sld [smem:[#allocation0]]
  $region34: #{tpu_custom_call.1} parent=0
    _
  %s5 = ssub.s32 1, %s3
  %s6 = scalar_select 0, %s5, %s3
  $region1: #{tpu_custom_call.1} parent=0
    #allocation3 [shape = 'u8[32768]{0}', space=vmem, size = 0x8000, scoped, tag = 'input window, operand 0, single buffered']
    #allocation4 [shape = 's32[1]{0}', space=sflag, size = 0x4, scoped, tag = 'scoped memory for tpu_custom_call.1']
    #allocation5 [shape = 's32[1]{0}', space=sflag, size = 0x4, scoped, tag = 'scoped memory for tpu_custom_call.1']
    #allocation6 [shape = 'u8[131072]{0}', space=vmem, size = 0x20000, scoped, tag = 'input window, operand 1, single buffered']
    #allocation7 [shape = 's32[1]{0}', space=sflag, size = 0x4, scoped, tag = 'scoped memory for tpu_custom_call.1']
    #allocation8 [shape = 'u8[4096]{0}', space=vmem, size = 0x1000, scoped, tag = 'output window, operand 0, single buffered']
    %7 = vsyncpa [#allocation4], 0
    %8 = vsyncpa [#allocation7], 0
    %9 = vsyncpa [#allocation5], 0
    // Predicated region
    $region2: #{tpu_custom_call.1} parent=1 // pred_check
      _
    $region3: #{tpu_custom_call.1} parent=1 // pred_check_branch
      %11 = sbr.rel (0) target = $region5
    $region4: #{tpu_custom_call.1} parent=1 // pred_region
      %13 = vsyncadd [#allocation4], 0
      %s15 = sshll.u32 %s0, 4
      %s16 = int_to_ptr.hbm [resolvable:$true] %s15
      %s17 = sshll.u32 [#allocation3], 4
      %s18 = int_to_ptr.vmem [resolvable:$true] %s17
      %20 = dma.hbm_to_vmem [thread:$0]  %s16, 1024, %s18, [#allocation4]
    $region5: #{tpu_custom_call.1} parent=1 // pred_fallthru
      _
    // Predicated region
    $region6: #{tpu_custom_call.1} parent=1 // pred_check
      _
    $region7: #{tpu_custom_call.1} parent=1 // pred_check_branch
      %22 = sbr.rel (0) target = $region9
    $region8: #{tpu_custom_call.1} parent=1 // pred_region
      %24 = vsyncadd [#allocation7], 0
      %s25 = sshll.u32 %s1, 4
      %s26 = int_to_ptr.hbm [resolvable:$true] %s25
      %s27 = sshll.u32 [#allocation6], 4
      %s28 = int_to_ptr.vmem [resolvable:$true] %s27
      %33 = dma.hbm_to_vmem [thread:$0]  %s26, 4096, %s28, [#allocation7], 1024, 1024, 64
    $region9: #{tpu_custom_call.1} parent=1 // pred_fallthru
      _
    // Predicated region
    $region10: #{tpu_custom_call.1} parent=1 // pred_check
      _
    $region11: #{tpu_custom_call.1} parent=1 // pred_check_branch
      %35 = sbr.rel (0) target = $region13
    $region12: #{tpu_custom_call.1} parent=1 // pred_region
      %37 = dma.done [#allocation4], 1024
    $region13: #{tpu_custom_call.1} parent=1 // pred_fallthru
      _
    // Predicated region
    $region14: #{tpu_custom_call.1} parent=1 // pred_check
      _
    $region15: #{tpu_custom_call.1} parent=1 // pred_check_branch
      %39 = sbr.rel (0) target = $region17
    $region16: #{tpu_custom_call.1} parent=1 // pred_region
      %41 = dma.done [#allocation7], 4096
    $region17: #{tpu_custom_call.1} parent=1 // pred_fallthru
      _
    %p42 = scmp.eq.s32.totalorder 0, 0
    // Predicated region
    $region18: #{tpu_custom_call.1} parent=1 // pred_check
      %p43 = pneg %p42
    $region19: #{tpu_custom_call.1} parent=1 // pred_check_branch
      %45 = sbr.rel (%p43) target = $region21
    $region20: #{tpu_custom_call.1} parent=1 // pred_region
      %vm46 = vcmask 261120
      %47 = vst.msk [vmem:[#allocation2] sm:$0xff] %vm46, 0.0
    $region21: #{tpu_custom_call.1} parent=1 // pred_fallthru
      _
    %v48 = vld [vmem:[#allocation2] sm:$0xff]
    %v49 = vld [vmem:[#allocation3] sm:$0xff]
    %v50 = vld [vmem:[#allocation3 + $0x8] sm:$0xff]
    %v51 = vld [vmem:[#allocation3 + $0x10] sm:$0xff]
    %v52 = vld [vmem:[#allocation3 + $0x18] sm:$0xff]
    %v53 = vld [vmem:[#allocation3 + $0x20] sm:$0xff]
    %v54 = vld [vmem:[#allocation3 + $0x28] sm:$0xff]
    %v55 = vld [vmem:[#allocation3 + $0x30] sm:$0xff]
    %v56 = vld [vmem:[#allocation3 + $0x38] sm:$0xff]
    %v57 = vld [vmem:[#allocation6] sm:$0xff]
    %v58 = vld [vmem:[#allocation6 + $0x8] sm:$0xff]
    %v59 = vld [vmem:[#allocation6 + $0x10] sm:$0xff]
    %v60 = vld [vmem:[#allocation6 + $0x18] sm:$0xff]
    %v61 = vld [vmem:[#allocation6 + $0x20] sm:$0xff]
    %v62 = vld [vmem:[#allocation6 + $0x28] sm:$0xff]
    %v63 = vld [vmem:[#allocation6 + $0x30] sm:$0xff]
    %v64 = vld [vmem:[#allocation6 + $0x38] sm:$0xff]
    %v65 = vld [vmem:[#allocation6 + $0x40] sm:$0xff]
    %v66 = vld [vmem:[#allocation6 + $0x48] sm:$0xff]
    %v67 = vld [vmem:[#allocation6 + $0x50] sm:$0xff]
    %v68 = vld [vmem:[#allocation6 + $0x58] sm:$0xff]
    %v69 = vld [vmem:[#allocation6 + $0x60] sm:$0xff]
    %v70 = vld [vmem:[#allocation6 + $0x68] sm:$0xff]
    %v71 = vld [vmem:[#allocation6 + $0x70] sm:$0xff]
    %v72 = vld [vmem:[#allocation6 + $0x78] sm:$0xff]
    %v73 = vld [vmem:[#allocation6 + $0x80] sm:$0xff]
    %v74 = vld [vmem:[#allocation6 + $0x88] sm:$0xff]
    %v75 = vld [vmem:[#allocation6 + $0x90] sm:$0xff]
    %v76 = vld [vmem:[#allocation6 + $0x98] sm:$0xff]
    %v77 = vld [vmem:[#allocation6 + $0xa0] sm:$0xff]
    %v78 = vld [vmem:[#allocation6 + $0xa8] sm:$0xff]
    %v79 = vld [vmem:[#allocation6 + $0xb0] sm:$0xff]
    %v80 = vld [vmem:[#allocation6 + $0xb8] sm:$0xff]
    %v81 = vld [vmem:[#allocation6 + $0xc0] sm:$0xff]
    %v82 = vld [vmem:[#allocation6 + $0xc8] sm:$0xff]
    %v83 = vld [vmem:[#allocation6 + $0xd0] sm:$0xff]
    %v84 = vld [vmem:[#allocation6 + $0xd8] sm:$0xff]
    %v85 = vld [vmem:[#allocation6 + $0xe0] sm:$0xff]
    %v86 = vld [vmem:[#allocation6 + $0xe8] sm:$0xff]
    %v87 = vld [vmem:[#allocation6 + $0xf0] sm:$0xff]
    %v88 = vld [vmem:[#allocation6 + $0xf8] sm:$0xff]
    %89 = vmatpush.xpose.msra.mxu0 0.0
    %90 = vmatpush.xpose.msra.mxu0 0.0
    %91 = vmatpush.xpose.msra.mxu0 0.0
    %92 = vmatpush.xpose.msra.mxu0 0.0
    %93 = vmatpush.xpose.msra.mxu0 0.0
    %94 = vmatpush.xpose.msra.mxu0 0.0
    %95 = vmatpush.xpose.msra.mxu0 0.0
    %96 = vmatpush.xpose.msra.mxu0 0.0
    %97 = vmatpush.xpose.msra.mxu0 0.0
    %98 = vmatpush.xpose.msra.mxu0 0.0
    %99 = vmatpush.xpose.msra.mxu0 0.0
    %100 = vmatpush.xpose.msra.mxu0 0.0
    %101 = vmatpush.xpose.msra.mxu0 %v81
    %102 = vmatpush.xpose.msra.mxu0 %v73
    %103 = vmatpush.xpose.msra.mxu0 %v65
    %104 = vmatpush.xpose.msra.mxu0 %v57
    %105 = vmatmul.f32.gmra.mxu0 %v49
    %v106 = vpop.f32.mrf.mxu0
    %v107 = vadd.f32 0.0, %v106
    %108 = vdwg.mxu0
    %109 = vmatpush.xpose.msra.mxu0 0.0
    %110 = vmatpush.xpose.msra.mxu0 0.0
    %111 = vmatpush.xpose.msra.mxu0 0.0
    %112 = vmatpush.xpose.msra.mxu0 0.0
    %113 = vmatpush.xpose.msra.mxu0 0.0
    %114 = vmatpush.xpose.msra.mxu0 0.0
    %115 = vmatpush.xpose.msra.mxu0 0.0
    %116 = vmatpush.xpose.msra.mxu0 0.0
    %117 = vmatpush.xpose.msra.mxu0 0.0
    %118 = vmatpush.xpose.msra.mxu0 0.0
    %119 = vmatpush.xpose.msra.mxu0 0.0
    %120 = vmatpush.xpose.msra.mxu0 0.0
    %121 = vmatpush.xpose.msra.mxu0 %v82
    %122 = vmatpush.xpose.msra.mxu0 %v74
    %123 = vmatpush.xpose.msra.mxu0 %v66
    %124 = vmatpush.xpose.msra.mxu0 %v58
    %125 = vmatmul.f32.gmra.mxu0 %v50
    %v126 = vpop.f32.mrf.mxu0
    %v127 = vadd.f32 %v107, %v126
    %128 = vdwg.mxu0
    %129 = vmatpush.xpose.msra.mxu0 0.0
    %130 = vmatpush.xpose.msra.mxu0 0.0
    %131 = vmatpush.xpose.msra.mxu0 0.0
    %132 = vmatpush.xpose.msra.mxu0 0.0
    %133 = vmatpush.xpose.msra.mxu0 0.0
    %134 = vmatpush.xpose.msra.mxu0 0.0
    %135 = vmatpush.xpose.msra.mxu0 0.0
    %136 = vmatpush.xpose.msra.mxu0 0.0
    %137 = vmatpush.xpose.msra.mxu0 0.0
    %138 = vmatpush.xpose.msra.mxu0 0.0
    %139 = vmatpush.xpose.msra.mxu0 0.0
    %140 = vmatpush.xpose.msra.mxu0 0.0
    %141 = vmatpush.xpose.msra.mxu0 %v83
    %142 = vmatpush.xpose.msra.mxu0 %v75
    %143 = vmatpush.xpose.msra.mxu0 %v67
    %144 = vmatpush.xpose.msra.mxu0 %v59
    %145 = vmatmul.f32.gmra.mxu0 %v51
    %v146 = vpop.f32.mrf.mxu0
    %v147 = vadd.f32 %v127, %v146
    %148 = vdwg.mxu0
    %149 = vmatpush.xpose.msra.mxu0 0.0
    %150 = vmatpush.xpose.msra.mxu0 0.0
    %151 = vmatpush.xpose.msra.mxu0 0.0
    %152 = vmatpush.xpose.msra.mxu0 0.0
    %153 = vmatpush.xpose.msra.mxu0 0.0
    %154 = vmatpush.xpose.msra.mxu0 0.0
    %155 = vmatpush.xpose.msra.mxu0 0.0
    %156 = vmatpush.xpose.msra.mxu0 0.0
    %157 = vmatpush.xpose.msra.mxu0 0.0
    %158 = vmatpush.xpose.msra.mxu0 0.0
    %159 = vmatpush.xpose.msra.mxu0 0.0
    %160 = vmatpush.xpose.msra.mxu0 0.0
    %161 = vmatpush.xpose.msra.mxu0 %v84
    %162 = vmatpush.xpose.msra.mxu0 %v76
    %163 = vmatpush.xpose.msra.mxu0 %v68
    %164 = vmatpush.xpose.msra.mxu0 %v60
    %165 = vmatmul.f32.gmra.mxu0 %v52
    %v166 = vpop.f32.mrf.mxu0
    %v167 = vadd.f32 %v147, %v166
    %168 = vdwg.mxu0
    %169 = vmatpush.xpose.msra.mxu0 0.0
    %170 = vmatpush.xpose.msra.mxu0 0.0
    %171 = vmatpush.xpose.msra.mxu0 0.0
    %172 = vmatpush.xpose.msra.mxu0 0.0
    %173 = vmatpush.xpose.msra.mxu0 0.0
    %174 = vmatpush.xpose.msra.mxu0 0.0
    %175 = vmatpush.xpose.msra.mxu0 0.0
    %176 = vmatpush.xpose.msra.mxu0 0.0
    %177 = vmatpush.xpose.msra.mxu0 0.0
    %178 = vmatpush.xpose.msra.mxu0 0.0
    %179 = vmatpush.xpose.msra.mxu0 0.0
    %180 = vmatpush.xpose.msra.mxu0 0.0
    %181 = vmatpush.xpose.msra.mxu0 %v85
    %182 = vmatpush.xpose.msra.mxu0 %v77
    %183 = vmatpush.xpose.msra.mxu0 %v69
    %184 = vmatpush.xpose.msra.mxu0 %v61
    %185 = vmatmul.f32.gmra.mxu0 %v53
    %v186 = vpop.f32.mrf.mxu0
    %v187 = vadd.f32 %v167, %v186
    %188 = vdwg.mxu0
    %189 = vmatpush.xpose.msra.mxu0 0.0
    %190 = vmatpush.xpose.msra.mxu0 0.0
    %191 = vmatpush.xpose.msra.mxu0 0.0
    %192 = vmatpush.xpose.msra.mxu0 0.0
    %193 = vmatpush.xpose.msra.mxu0 0.0
    %194 = vmatpush.xpose.msra.mxu0 0.0
    %195 = vmatpush.xpose.msra.mxu0 0.0
    %196 = vmatpush.xpose.msra.mxu0 0.0
    %197 = vmatpush.xpose.msra.mxu0 0.0
    %198 = vmatpush.xpose.msra.mxu0 0.0
    %199 = vmatpush.xpose.msra.mxu0 0.0
    %200 = vmatpush.xpose.msra.mxu0 0.0
    %201 = vmatpush.xpose.msra.mxu0 %v86
    %202 = vmatpush.xpose.msra.mxu0 %v78
    %203 = vmatpush.xpose.msra.mxu0 %v70
    %204 = vmatpush.xpose.msra.mxu0 %v62
    %205 = vmatmul.f32.gmra.mxu0 %v54
    %v206 = vpop.f32.mrf.mxu0
    %v207 = vadd.f32 %v187, %v206
    %208 = vdwg.mxu0
    %209 = vmatpush.xpose.msra.mxu0 0.0
    %210 = vmatpush.xpose.msra.mxu0 0.0
    %211 = vmatpush.xpose.msra.mxu0 0.0
    %212 = vmatpush.xpose.msra.mxu0 0.0
    %213 = vmatpush.xpose.msra.mxu0 0.0
    %214 = vmatpush.xpose.msra.mxu0 0.0
    %215 = vmatpush.xpose.msra.mxu0 0.0
    %216 = vmatpush.xpose.msra.mxu0 0.0
    %217 = vmatpush.xpose.msra.mxu0 0.0
    %218 = vmatpush.xpose.msra.mxu0 0.0
    %219 = vmatpush.xpose.msra.mxu0 0.0
    %220 = vmatpush.xpose.msra.mxu0 0.0
    %221 = vmatpush.xpose.msra.mxu0 %v87
    %222 = vmatpush.xpose.msra.mxu0 %v79
    %223 = vmatpush.xpose.msra.mxu0 %v71
    %224 = vmatpush.xpose.msra.mxu0 %v63
    %225 = vmatmul.f32.gmra.mxu0 %v55
    %v226 = vpop.f32.mrf.mxu0
    %v227 = vadd.f32 %v207, %v226
    %228 = vdwg.mxu0
    %229 = vmatpush.xpose.msra.mxu0 0.0
    %230 = vmatpush.xpose.msra.mxu0 0.0
    %231 = vmatpush.xpose.msra.mxu0 0.0
    %232 = vmatpush.xpose.msra.mxu0 0.0
    %233 = vmatpush.xpose.msra.mxu0 0.0
    %234 = vmatpush.xpose.msra.mxu0 0.0
    %235 = vmatpush.xpose.msra.mxu0 0.0
    %236 = vmatpush.xpose.msra.mxu0 0.0
    %237 = vmatpush.xpose.msra.mxu0 0.0
    %238 = vmatpush.xpose.msra.mxu0 0.0
    %239 = vmatpush.xpose.msra.mxu0 0.0
    %240 = vmatpush.xpose.msra.mxu0 0.0
    %241 = vmatpush.xpose.msra.mxu0 %v88
    %242 = vmatpush.xpose.msra.mxu0 %v80
    %243 = vmatpush.xpose.msra.mxu0 %v72
    %244 = vmatpush.xpose.msra.mxu0 %v64
    %245 = vmatmul.f32.gmra.mxu0 %v56
    %v246 = vpop.f32.mrf.mxu0
    %v247 = vadd.f32 %v227, %v246
    %248 = vdwg.mxu0
    %v249 = vadd.f32 %v48, %v247
    %vm250 = vcmask 261120
    %251 = vst.msk [vmem:[#allocation2] sm:$0xff] %vm250, %v249
    // Predicated region
    $region22: #{tpu_custom_call.1} parent=1 // pred_check
      %p252 = pneg %p42
    $region23: #{tpu_custom_call.1} parent=1 // pred_check_branch
      %254 = sbr.rel (%p252) target = $region25
    $region24: #{tpu_custom_call.1} parent=1 // pred_region
      %v255 = vld [vmem:[#allocation2] sm:$0xff]
      %256 = vst.msk [vmem:[#allocation8] sm:$0xff] %vm250, %v255
    $region25: #{tpu_custom_call.1} parent=1 // pred_fallthru
      _
    // Predicated region
    $region26: #{tpu_custom_call.1} parent=1 // pred_check
      _
    $region27: #{tpu_custom_call.1} parent=1 // pred_check_branch
      %258 = sbr.rel (0) target = $region29
    $region28: #{tpu_custom_call.1} parent=1 // pred_region
      %260 = vsyncadd [#allocation5], 0
      %s262 = sshll.u32 [#allocation8], 4
      %s263 = int_to_ptr.vmem [resolvable:$true] %s262
      %s264 = sshll.u32 %s2, 4
      %s265 = int_to_ptr.hbm [resolvable:$true] %s264
      %267 = dma.vmem_to_hbm [thread:$0]  %s263, 128, %s265, [#allocation5]
    $region29: #{tpu_custom_call.1} parent=1 // pred_fallthru
      _
    // Predicated region
    $region30: #{tpu_custom_call.1} parent=1 // pred_check
      _
    $region31: #{tpu_custom_call.1} parent=1 // pred_check_branch
      %269 = sbr.rel (0) target = $region33
    $region32: #{tpu_custom_call.1} parent=1 // pred_region
      %271 = dma.done [#allocation5], 128
    $region33: #{tpu_custom_call.1} parent=1 // pred_fallthru
      _
    %272 = vsyncpa [#allocation4], 1
    %273 = vsyncpa [#allocation7], 1
    %274 = vsyncpa [#allocation5], 1

</llo_original>
